<compile_context>
chip_gen: v6e
topology: v6e:2x2x1
jax: 0.10.0
libtpu: 0.0.40
codegen_flags: <defaults>
</compile_context>

<pallas_src>
import numpy as np
import jax
import jax.numpy as jnp
from jax.experimental import pallas as pl
from jax.experimental.pallas import tpu as pltpu


# ---------------------------------------------------------------------------
# Glue (plain JAX): gcn-normalized dense adjacency (mirrors buildAdj(aggr='gcn'))
# ---------------------------------------------------------------------------
def build_adj_gcn(edge_index, edge_weight, n_node):
    row, col = edge_index[0], edge_index[1]
    deg = jnp.zeros((n_node,), jnp.float32).at[row].add(1.0)
    deg = jnp.where(deg < 0.5, deg + 1.0, deg)
    dinv = deg ** -0.5
    val = dinv[row] * edge_weight * dinv[col]
    # scatter-add == SparseTensor(...).coalesce() (duplicates summed), densified
    adj = jnp.zeros((n_node, n_node), jnp.float32).at[row, col].add(val)
    return adj


def _pick_tile(n, candidates=(512, 256, 128)):
    """Largest tile that exactly divides n; fall back to the full extent for tiny/odd n."""
    for c in candidates:
        if n % c == 0:
            return c
    return n


# ---------------------------------------------------------------------------
# Pallas kernel: one polynomial order, fused over the M tuples.
#   S_k  = alpha_k  (per-lane)  *  (A @ S_{k-1})        -- one MXU matmul / (i,j) tile
#   sh_k = S_k @ R   with  R[m*F+f, f] = w[m]/M         -- weighted mean over m
# Grid = (node-row blocks [parallel], adj-column blocks [arbitrary reduction]).
# The output state block index depends only on the row block, so it stays VMEM-resident
# across the reduction axis and acts as the accumulator (init / finalize via pl.when).
# ---------------------------------------------------------------------------
def _poly_prop_kernel(alpha_ref, adj_ref, s_prev_ref, reduce_ref,
                      s_new_ref, sh_ref):
    j = pl.program_id(1)

    @pl.when(j == 0)
    def _():
        s_new_ref[...] = jnp.zeros_like(s_new_ref)

    # One (TR, TC) x (TC, M*Fp) MXU matmul per grid step, accumulated in f32.
    s_new_ref[...] += jnp.dot(adj_ref[...], s_prev_ref[...],
                              preferred_element_type=jnp.float32)

    @pl.when(j == pl.num_programs(1) - 1)
    def _():
        # Fold alpha_{k,m} in once (per-lane vector, broadcast over rows) so both
        # consumers (the next order's matmul and the weighted mean) see scaled data.
        y = s_new_ref[...] * alpha_ref[...]
        s_new_ref[...] = y
        # w-weighted mean over the M tuples == small matmul with the reduce matrix.
        sh_ref[...] = jnp.dot(y, reduce_ref[...],
                              preferred_element_type=jnp.float32)


def _make_prop_call(n_node, feat, mfp, tile):
    n_blk = n_node // tile
    grid = (n_blk, n_blk)

    # Rough per-step VMEM (f32, double-buffered inputs+outputs) -> explicit scoped limit.
    est = 4 * 2 * (mfp                 # alpha row
                   + tile * tile       # adj tile
                   + tile * mfp        # prev-state tile
                   + mfp * feat        # reduce matrix
                   + tile * mfp        # new-state tile
                   + tile * feat)      # sh tile
    vmem_limit = int(min(48 * 2**20, max(16 * 2**20, 4 * est)))

    return pl.pallas_call(
        _poly_prop_kernel,
        grid_spec=pltpu.PrefetchScalarGridSpec(
            num_scalar_prefetch=0,
            grid=grid,
            in_specs=[
                pl.BlockSpec((1, mfp), lambda i, j: (0, 0)),       # per-order alpha lanes
                pl.BlockSpec((tile, tile), lambda i, j: (i, j)),   # adj tile
                pl.BlockSpec((tile, mfp), lambda i, j: (j, 0)),    # previous fused state
                pl.BlockSpec((mfp, feat), lambda i, j: (0, 0)),    # reduce matrix
            ],
            out_specs=[
                pl.BlockSpec((tile, mfp), lambda i, j: (i, 0)),    # new fused state
                pl.BlockSpec((tile, feat), lambda i, j: (i, 0)),   # sh_k
            ],
        ),
        out_shape=(
            jax.ShapeDtypeStruct((n_node, mfp), jnp.float32),
            jax.ShapeDtypeStruct((n_node, feat), jnp.float32),
        ),
        compiler_params=pltpu.CompilerParams(
            dimension_semantics=("parallel", "arbitrary"),
            vmem_limit_bytes=vmem_limit,
        ),
    )


def multiple_poly_conv_forward(x, edge_index, edge_attr, alphas, w, depth):
    """Returns sh of shape (N, depth+1, F), matching the torch module output."""
    n_node, feat = x.shape
    M = w.shape[0]
    adj = build_adj_gcn(edge_index, edge_attr, n_node)

    mf = M * feat
    mfp = ((mf + 127) // 128) * 128          # pad fused lane dim to a multiple of 128
    tile = _pick_tile(n_node)

    x32 = x.astype(jnp.float32)
    w32 = w.astype(jnp.float32)
    a32 = alphas.astype(jnp.float32)

    # S_0 = [x | x | ... | x]  (M lane-concatenated copies), zero padded to mfp lanes.
    s = jnp.pad(jnp.tile(x32, (1, M)), ((0, 0), (0, mfp - mf)))

    # Per-order per-lane alpha vectors: alphas[k-1, m] repeated across each F block.
    alpha_rows = jnp.pad(jnp.repeat(a32, feat, axis=1), ((0, 0), (0, mfp - mf)))

    # Weighted-mean reduce matrix: R[m*F + f, f] = w[m] / M  (padding rows are zero).
    eye = jnp.eye(feat, dtype=jnp.float32)
    reduce_mat = (w32[:, None, None] / M * eye[None]).reshape(mf, feat)
    reduce_mat = jnp.pad(reduce_mat, ((0, mfp - mf), (0, 0)))

    prop = _make_prop_call(n_node, feat, mfp, tile)

    # Order 0: mean_m(w[m] * x) == x * mean(w)  (tiny elementwise op, done in the wrapper).
    sh_list = [x32 * jnp.mean(w32)]
    for k in range(1, depth + 1):
        s, sh_k = prop(alpha_rows[k - 1:k], adj, s, reduce_mat)
        sh_list.append(sh_k)

    return jnp.stack(sh_list, axis=1)        # (N, depth+1, F)


# ---------------------------------------------------------------------------
# Pure-JAX reference (direct transcription of the torch forward)
# ---------------------------------------------------------------------------
def reference_forward(x, edge_index, edge_attr, alphas, w, depth):
    M = w.shape[0]
    adj = build_adj_gcn(edge_index, edge_attr, x.shape[0])
    mm = lambda a, b: jnp.matmul(a, b, precision=jax.lax.Precision.HIGHEST)
    xs = [x] * M
    xs_list = [xs]
    for k in range(1, depth + 1):
        xs = [alphas[k - 1, m] * mm(adj, xs_list[-1][m]) for m in range(M)]
        xs_list.append(xs)
    # stack each order over m (dim 1), then orders (dim 2): h is (N, M, depth+1, F)
    h = jnp.stack([jnp.stack(xs, axis=1) for xs in xs_list], axis=2)
    wh = w[None, :, None, None] * h
    return wh.mean(axis=1)


if __name__ == "__main__":
    # ---- module hyper-parameters (matches __init__ defaults) ----
    depth = 3
    alpha = 1.0
    step = 0.5
    ab_tuple_list = [(0.0, b) for b in np.arange(0, 2, step)] + \
                    [(a, 0.0) for a in np.arange(0 + step, 2, step)]
    M = len(ab_tuple_list)                       # 7
    base_alpha = float(min(1.0 / alpha, 1.0))    # 1.0

    # ---- deterministic small inputs (N chosen so the kernel runs a real 3x3 tiled grid) ----
    n_node, feat, n_edge = 384, 32, 1536
    key = jax.random.PRNGKey(0)
    k1, k2, k3, k4, k5, k6 = jax.random.split(key, 6)
    row = jax.random.randint(k1, (n_edge,), 0, n_node)
    col = jax.random.randint(k2, (n_edge,), 0, n_node)
    edge_index = jnp.stack([row, col], axis=0)
    edge_attr = jax.random.uniform(k3, (n_edge,), jnp.float32, 0.5, 1.5)
    x = jax.random.normal(k4, (n_node, feat), jnp.float32)

    # Learnable params: init is base_alpha / ones; perturb deterministically so the
    # per-(k,m) alpha and per-m w paths are actually exercised by the numerical check.
    alphas = base_alpha + 0.1 * jax.random.normal(k5, (depth, M), jnp.float32)
    w = 1.0 + 0.1 * jax.random.normal(k6, (M,), jnp.float32)
    # a_list / b_list exist in the module but are unused by this PowerConv-style conv_fn.
    # TODO(synk): wire a_list/b_list into a Jacobi-recurrence conv_fn if that variant is needed.

    sh = multiple_poly_conv_forward(x, edge_index, edge_attr, alphas, w, depth)
    sh = jax.block_until_ready(sh)
    assert sh.shape == (n_node, depth + 1, feat), sh.shape

    ref = reference_forward(x, edge_index, edge_attr, alphas, w, depth)
    np.testing.assert_allclose(np.asarray(sh), np.asarray(ref), rtol=1e-4, atol=1e-4)

    print("KERNEL_OK")
</pallas_src>

<mosaic_0001>
module attributes {stable_mosaic.version = 11 : i64} {
  func.func @_poly_prop_kernel(%arg0: i32, %arg1: i32, %arg2: memref<1x256xf32, #tpu.memory_space<vmem>>, %arg3: memref<128x128xf32, #tpu.memory_space<vmem>>, %arg4: memref<128x256xf32, #tpu.memory_space<vmem>>, %arg5: memref<256x32xf32, #tpu.memory_space<vmem>>, %arg6: memref<128x256xf32, #tpu.memory_space<vmem>>, %arg7: memref<128x32xf32, #tpu.memory_space<vmem>>) attributes {dimension_semantics = [#tpu.dimension_semantics<parallel>, #tpu.dimension_semantics<arbitrary>], iteration_bounds = array<i64: 3, 3>, scalar_prefetch = 0 : i64, scratch_operands = 0 : i64, tpu.core_type = #tpu.core_type<tc>, window_params = [{pipeline_mode = #tpu.pipeline_mode<synchronous>, transform_indices = @transform_0, window_bounds = array<i64: 1, 256>}, {transform_indices = @transform_1, window_bounds = array<i64: 128, 128>}, {transform_indices = @transform_2, window_bounds = array<i64: 128, 256>}, {pipeline_mode = #tpu.pipeline_mode<synchronous>, transform_indices = @transform_3, window_bounds = array<i64: 256, 32>}, {transform_indices = @transform_4, window_bounds = array<i64: 128, 256>}, {transform_indices = @transform_5, window_bounds = array<i64: 128, 32>}]} {
    %c0_i32 = arith.constant 0 : i32
    %0 = arith.cmpi eq, %arg1, %c0_i32 : i32
    %1 = arith.extui %0 : i1 to i32
    %c0_i32_0 = arith.constant 0 : i32
    %2 = arith.cmpi ne, %1, %c0_i32_0 : i32
    scf.if %2 {
      %cst_9 = arith.constant 0.000000e+00 : f32
      %12 = vector.broadcast %cst_9 : f32 to vector<128x256xf32>
      %c0_10 = arith.constant 0 : index
      %c0_11 = arith.constant 0 : index
      %13 = vector.load %arg6[%c0_10, %c0_11] : memref<128x256xf32, #tpu.memory_space<vmem>>, vector<128x256xf32>
      tpu.vector_store %arg6[%c0_10, %c0_11], %12 {strides = array<i32>} : memref<128x256xf32, #tpu.memory_space<vmem>>, vector<128x256xf32>,
    } else {
    }
    %c0 = arith.constant 0 : index
    %c0_1 = arith.constant 0 : index
    %3 = vector.load %arg6[%c0, %c0_1] : memref<128x256xf32, #tpu.memory_space<vmem>>, vector<128x256xf32>
    %c0_2 = arith.constant 0 : index
    %c0_3 = arith.constant 0 : index
    %4 = vector.load %arg3[%c0_2, %c0_3] : memref<128x128xf32, #tpu.memory_space<vmem>>, vector<128x128xf32>
    %c0_4 = arith.constant 0 : index
    %c0_5 = arith.constant 0 : index
    %5 = vector.load %arg4[%c0_4, %c0_5] : memref<128x256xf32, #tpu.memory_space<vmem>>, vector<128x256xf32>
    %cst = arith.constant dense<0.000000e+00> : vector<128x256xf32>
    %6 = tpu.matmul %4, %5, %cst {dimension_numbers = #tpu.dot_dimension_numbers<[1], [0], [0], [1], [0, 0, 1, 1], [], []>} : vector<128x128xf32>, vector<128x256xf32>, vector<128x256xf32> -> vector<128x256xf32>
    %7 = arith.addf %3, %6 : vector<128x256xf32>
    %c0_6 = arith.constant 0 : index
    %c0_7 = arith.constant 0 : index
    %8 = vector.load %arg6[%c0_6, %c0_7] : memref<128x256xf32, #tpu.memory_space<vmem>>, vector<128x256xf32>
    tpu.vector_store %arg6[%c0_6, %c0_7], %7 {strides = array<i32>} : memref<128x256xf32, #tpu.memory_space<vmem>>, vector<128x256xf32>,
    %c2_i32 = arith.constant 2 : i32
    %9 = arith.cmpi eq, %arg1, %c2_i32 : i32
    %10 = arith.extui %9 : i1 to i32
    %c0_i32_8 = arith.constant 0 : i32
    %11 = arith.cmpi ne, %10, %c0_i32_8 : i32
    scf.if %11 {
      %c0_9 = arith.constant 0 : index
      %c0_10 = arith.constant 0 : index
      %12 = vector.load %arg6[%c0_9, %c0_10] : memref<128x256xf32, #tpu.memory_space<vmem>>, vector<128x256xf32>
      %c0_11 = arith.constant 0 : index
      %c0_12 = arith.constant 0 : index
      %13 = vector.load %arg2[%c0_11, %c0_12] : memref<1x256xf32, #tpu.memory_space<vmem>>, vector<1x256xf32>
      %14 = vector.broadcast %13 : vector<1x256xf32> to vector<128x256xf32>
      %15 = arith.mulf %12, %14 : vector<128x256xf32>
      %c0_13 = arith.constant 0 : index
      %c0_14 = arith.constant 0 : index
      %16 = vector.load %arg6[%c0_13, %c0_14] : memref<128x256xf32, #tpu.memory_space<vmem>>, vector<128x256xf32>
      tpu.vector_store %arg6[%c0_13, %c0_14], %15 {strides = array<i32>} : memref<128x256xf32, #tpu.memory_space<vmem>>, vector<128x256xf32>,
      %c0_15 = arith.constant 0 : index
      %c0_16 = arith.constant 0 : index
      %17 = vector.load %arg5[%c0_15, %c0_16] : memref<256x32xf32, #tpu.memory_space<vmem>>, vector<256x32xf32>
      %cst_17 = arith.constant dense<0.000000e+00> : vector<128x32xf32>
      %18 = tpu.matmul %15, %17, %cst_17 {dimension_numbers = #tpu.dot_dimension_numbers<[1], [0], [0], [1], [0, 0, 1, 1], [], []>} : vector<128x256xf32>, vector<256x32xf32>, vector<128x32xf32> -> vector<128x32xf32>
      %c0_18 = arith.constant 0 : index
      %c0_19 = arith.constant 0 : index
      %19 = vector.load %arg7[%c0_18, %c0_19] : memref<128x32xf32, #tpu.memory_space<vmem>>, vector<128x32xf32>
      tpu.vector_store %arg7[%c0_18, %c0_19], %18 {strides = array<i32>} : memref<128x32xf32, #tpu.memory_space<vmem>>, vector<128x32xf32>,
    } else {
    }
    return
  }
  func.func @transform_0(%arg0: i32, %arg1: i32) -> (i32, i32) {
    %c0_i32 = arith.constant 0 : i32
    %c0_i32_0 = arith.constant 0 : i32
    %c0_i32_1 = arith.constant 0 : i32
    return %c0_i32, %c0_i32_0 : i32, i32
  }
  func.func @transform_1(%arg0: i32, %arg1: i32) -> (i32, i32) {
    %c0_i32 = arith.constant 0 : i32
    return %arg0, %arg1 : i32, i32
  }
  func.func @transform_2(%arg0: i32, %arg1: i32) -> (i32, i32) {
    %c0_i32 = arith.constant 0 : i32
    %c0_i32_0 = arith.constant 0 : i32
    return %arg1, %c0_i32 : i32, i32
  }
  func.func @transform_3(%arg0: i32, %arg1: i32) -> (i32, i32) {
    %c0_i32 = arith.constant 0 : i32
    %c0_i32_0 = arith.constant 0 : i32
    %c0_i32_1 = arith.constant 0 : i32
    return %c0_i32, %c0_i32_0 : i32, i32
  }
  func.func @transform_4(%arg0: i32, %arg1: i32) -> (i32, i32) {
    %c0_i32 = arith.constant 0 : i32
    %c0_i32_0 = arith.constant 0 : i32
    return %arg0, %c0_i32 : i32, i32
  }
  func.func @transform_5(%arg0: i32, %arg1: i32) -> (i32, i32) {
    %c0_i32 = arith.constant 0 : i32
    %c0_i32_0 = arith.constant 0 : i32
    return %arg0, %c0_i32 : i32, i32
  }
}

</mosaic_0001>

<llo_original>
// kernel: tpu_custom_call.1
$region0: #{tpu_custom_call.1}
  #allocation0 [shape = 'u32[]', space=smem, size = 0x4, offset = 0x4, fixed_abs, tag = 'smem constant byte address 0x4 - core index']
  #allocation1 [shape = 'u32[144,128]{1,0:T(1,128)}', space=vmem, size = 0x12000, scoped, tag = 'internal scratch']
  %s0 = inlined_call_operand.vmem [shape: f32[1,256], index: 0, kind: input, shape index: {}]
  %s1 = inlined_call_operand.hbm [shape: f32[384,384], index: 1, kind: input, shape index: {}]
  %s2 = inlined_call_operand.hbm [shape: f32[384,256], index: 2, kind: input, shape index: {}]
  %s3 = inlined_call_operand.vmem [shape: f32[256,32], index: 3, kind: input, shape index: {}]
  %s4 = inlined_call_operand.hbm [shape: f32[384,256], index: 4, kind: output, shape index: {0}]
  %s5 = inlined_call_operand.vmem [shape: f32[384,32], index: 5, kind: output, shape index: {1}]
  %6 = xla_tuple %s4, %s5
  %s7 = sld [smem:[#allocation0]]
  $region73: #{tpu_custom_call.1} parent=0
    _
  %s9 = ssub.s32 1, %s7
  %s10 = scalar_select 0, %s9, %s7
  $region1: #{tpu_custom_call.1} parent=0
    #allocation2 [shape = 'u8[131072]{0}', space=vmem, size = 0x20000, scoped, tag = 'input window, operand 1']
    #allocation3 [shape = 's32[2]{0}', space=sflag, size = 0x8, scoped, tag = 'scoped memory for tpu_custom_call.1']
    #allocation4 [shape = 's32[2]{0}', space=sflag, size = 0x8, scoped, tag = 'scoped memory for tpu_custom_call.1']
    #allocation5 [shape = 'u8[262144]{0}', space=vmem, size = 0x40000, scoped, tag = 'input window, operand 2']
    #allocation6 [shape = 's32[2]{0}', space=sflag, size = 0x8, scoped, tag = 'scoped memory for tpu_custom_call.1']
    #allocation7 [shape = 'u8[262144]{0}', space=vmem, size = 0x40000, scoped, tag = 'output window, operand 0']
    %11 = vsyncpa [#allocation3], 0
    %s12 = scalar_lea.sflag [#allocation3], 1
    %13 = vsyncpa %s12, 0
    %14 = vsyncpa [#allocation6], 0
    %s15 = scalar_lea.sflag [#allocation6], 1
    %16 = vsyncpa %s15, 0
    %17 = vsyncpa [#allocation4], 0
    %s18 = scalar_lea.sflag [#allocation4], 1
    %19 = vsyncpa %s18, 0
    loop: start=0, step=1, limit=11
    $region2: #{tpu_custom_call.1} parent=1 // loop_pre_header
      _
    $region3: #{tpu_custom_call.1} parent=1 // loop_header
      %s21 = sphi 0, %s25
      %p22 = scmp.ge.s32.totalorder %s21, 11
      %s28 = sphi 0, %s40
      %s29 = sphi 0, %s36
      %s30 = sphi 0, %s28
      %s31 = sphi 0, %s29
      %s32 = sphi 0, %s30
      %s33 = sphi 0, %s31
      %s41 = sphi 0, %s41
      %s43 = sphi 0, %s41
      %s44 = sphi 0, %s43
      %s58 = sphi 0, %s44
      %s66 = sphi 0, %s68
      %s69 = sphi 0, %s66
      %s70 = sphi 0, %s69
      %s86 = sphi 0, %s70
      %s92 = sphi 0, %s94
      %s95 = sphi 0, %s92
      %s96 = sphi 0, %s95
      %s112 = sphi 0, %s96
      %s116 = sphi 0, %s116
      %s118 = sphi 0, %s116
      %s119 = sphi 0, %s118
      %s133 = sphi 0, %s119
      %s139 = sphi 0, %s141
      %s142 = sphi 0, %s139
      %s143 = sphi 0, %s142
      %s159 = sphi 0, %s143
      %s165 = sphi 0, %s167
      %s168 = sphi 0, %s165
      %s169 = sphi 0, %s168
      %s185 = sphi 0, %s169
    $region4: #{tpu_custom_call.1} parent=1 // loop_header_branch
      %24 = sbr.rel (%p22) target = $region8
    $region5: #{tpu_custom_call.1} parent=1 // loop_body
      %s26 = ssub.s32 %s21, 1
      %s27 = ssub.s32 %s21, 2
      %s34 = sadd.s32 1, %s29
      %p35 = scmp.ge.s32.totalorder %s34, 3
      %s36 = scalar_select %p35, 0, %s34
      %s37 = sadd.s32 1, %s28
      %s38 = scalar_select %p35, %s37, %s28
      %p39 = scmp.ge.s32.totalorder %s38, 3
      %s40 = scalar_select %p39, 0, %s38
      %s42 = sadd.s32 %s41, 1
      %p45 = scmp.eq.s32.totalorder %s21, 8
      %p46 = scmp.ne.s32.totalorder %s41, %s43
      %p47 = scmp.eq.s32.totalorder %s21, 0
      %p48 = por %p46, %p47
      %p49 = scmp.ne.s32.totalorder %s41, %s43
      %p50 = scmp.eq.s32.totalorder %s26, 8
      %p51 = por %p49, %p50
      %p52 = scmp.ne.s32.totalorder %s43, %s44
      %p53 = scmp.eq.s32.totalorder %s26, 0
      %p54 = por %p52, %p53
      %p55 = scmp.ne.s32.totalorder %s43, %s44
      %p56 = scmp.eq.s32.totalorder %s27, 8
      %p57 = por %p55, %p56
      %p59 = scmp.ne.s32.totalorder %s44, %s58
      %p60 = scmp.eq.s32.totalorder %s27, 0
      %p61 = por %p59, %p60
      %s62 = ssub.s32 %s28, %s40
      %s63 = ssub.s32 %s29, %s36
      %s64 = sor.u32 %s62, %s63
      %p65 = scmp.eq.s32.totalorder %s64, 0
      %s67 = sadd.s32 %s66, 1
      %s68 = scalar_select %p65, %s66, %s67
      %p71 = pneg %p65
      %p72 = scmp.eq.s32.totalorder %s21, 8
      %p73 = por %p71, %p72
      %p74 = scmp.ne.s32.totalorder %s66, %s69
      %p75 = scmp.eq.s32.totalorder %s21, 0
      %p76 = por %p74, %p75
      %p77 = scmp.ne.s32.totalorder %s66, %s69
      %p78 = scmp.eq.s32.totalorder %s26, 8
      %p79 = por %p77, %p78
      %p80 = scmp.ne.s32.totalorder %s69, %s70
      %p81 = scmp.eq.s32.totalorder %s26, 0
      %p82 = por %p80, %p81
      %p83 = scmp.ne.s32.totalorder %s69, %s70
      %p84 = scmp.eq.s32.totalorder %s27, 8
      %p85 = por %p83, %p84
      %p87 = scmp.ne.s32.totalorder %s70, %s86
      %p88 = scmp.eq.s32.totalorder %s27, 0
      %p89 = por %p87, %p88
      %s90 = ssub.s32 %s29, %s36
      %p91 = scmp.eq.s32.totalorder %s90, 0
      %s93 = sadd.s32 %s92, 1
      %s94 = scalar_select %p91, %s92, %s93
      %p97 = pneg %p91
      %p98 = scmp.eq.s32.totalorder %s21, 8
      %p99 = por %p97, %p98
      %p100 = scmp.ne.s32.totalorder %s92, %s95
      %p101 = scmp.eq.s32.totalorder %s21, 0
      %p102 = por %p100, %p101
      %p103 = scmp.ne.s32.totalorder %s92, %s95
      %p104 = scmp.eq.s32.totalorder %s26, 8
      %p105 = por %p103, %p104
      %p106 = scmp.ne.s32.totalorder %s95, %s96
      %p107 = scmp.eq.s32.totalorder %s26, 0
      %p108 = por %p106, %p107
      %p109 = scmp.ne.s32.totalorder %s95, %s96
      %p110 = scmp.eq.s32.totalorder %s27, 8
      %p111 = por %p109, %p110
      %p113 = scmp.ne.s32.totalorder %s96, %s112
      %p114 = scmp.eq.s32.totalorder %s27, 0
      %p115 = por %p113, %p114
      %s117 = sadd.s32 %s116, 1
      %p120 = scmp.eq.s32.totalorder %s21, 8
      %p121 = scmp.ne.s32.totalorder %s116, %s118
      %p122 = scmp.eq.s32.totalorder %s21, 0
      %p123 = por %p121, %p122
      %p124 = scmp.ne.s32.totalorder %s116, %s118
      %p125 = scmp.eq.s32.totalorder %s26, 8
      %p126 = por %p124, %p125
      %p127 = scmp.ne.s32.totalorder %s118, %s119
      %p128 = scmp.eq.s32.totalorder %s26, 0
      %p129 = por %p127, %p128
      %p130 = scmp.ne.s32.totalorder %s118, %s119
      %p131 = scmp.eq.s32.totalorder %s27, 8
      %p132 = por %p130, %p131
      %p134 = scmp.ne.s32.totalorder %s119, %s133
      %p135 = scmp.eq.s32.totalorder %s27, 0
      %p136 = por %p134, %p135
      %s137 = ssub.s32 %s28, %s40
      %p138 = scmp.eq.s32.totalorder %s137, 0
      %s140 = sadd.s32 %s139, 1
      %s141 = scalar_select %p138, %s139, %s140
      %p144 = pneg %p138
      %p145 = scmp.eq.s32.totalorder %s21, 8
      %p146 = por %p144, %p145
      %p147 = scmp.ne.s32.totalorder %s139, %s142
      %p148 = scmp.eq.s32.totalorder %s21, 0
      %p149 = por %p147, %p148
      %p150 = scmp.ne.s32.totalorder %s139, %s142
      %p151 = scmp.eq.s32.totalorder %s26, 8
      %p152 = por %p150, %p151
      %p153 = scmp.ne.s32.totalorder %s142, %s143
      %p154 = scmp.eq.s32.totalorder %s26, 0
      %p155 = por %p153, %p154
      %p156 = scmp.ne.s32.totalorder %s142, %s143
      %p157 = scmp.eq.s32.totalorder %s27, 8
      %p158 = por %p156, %p157
      %p160 = scmp.ne.s32.totalorder %s143, %s159
      %p161 = scmp.eq.s32.totalorder %s27, 0
      %p162 = por %p160, %p161
      %s163 = ssub.s32 %s28, %s40
      %p164 = scmp.eq.s32.totalorder %s163, 0
      %s166 = sadd.s32 %s165, 1
      %s167 = scalar_select %p164, %s165, %s166
      %p170 = pneg %p164
      %p171 = scmp.eq.s32.totalorder %s21, 8
      %p172 = por %p170, %p171
      %p173 = scmp.ne.s32.totalorder %s165, %s168
      %p174 = scmp.eq.s32.totalorder %s21, 0
      %p175 = por %p173, %p174
      %p176 = scmp.ne.s32.totalorder %s165, %s168
      %p177 = scmp.eq.s32.totalorder %s26, 8
      %p178 = por %p176, %p177
      %p179 = scmp.ne.s32.totalorder %s168, %s169
      %p180 = scmp.eq.s32.totalorder %s26, 0
      %p181 = por %p179, %p180
      %p182 = scmp.ne.s32.totalorder %s168, %s169
      %p183 = scmp.eq.s32.totalorder %s27, 8
      %p184 = por %p182, %p183
      %p186 = scmp.ne.s32.totalorder %s169, %s185
      %p187 = scmp.eq.s32.totalorder %s27, 0
      %p188 = por %p186, %p187
      %p189 = scmp.le.s32.totalorder 1, %s21
      %p190 = scmp.lt.s32.totalorder %s21, 10
      %p191 = pnand %p189, %p190
      %p192 = pneg %p191
      // Predicated region
      $region9: #{tpu_custom_call.1} parent=5 // pred_check
        _
      $region10: #{tpu_custom_call.1} parent=5 // pred_check_branch
        %194 = sbr.rel (%p191) target = $region12
      $region11: #{tpu_custom_call.1} parent=5 // pred_region
        %s195 = ssub.s32 %s21, 1
        // Predicated region
        $region13: #{tpu_custom_call.1} parent=11 // pred_check
          %p196 = pneg %p54
        $region14: #{tpu_custom_call.1} parent=11 // pred_check_branch
          %198 = sbr.rel (%p196) target = $region16
        $region15: #{tpu_custom_call.1} parent=11 // pred_region
          _
        $region16: #{tpu_custom_call.1} parent=11 // pred_fallthru
          _
        // Predicated region
        $region17: #{tpu_custom_call.1} parent=11 // pred_check
          %p199 = pneg %p129
        $region18: #{tpu_custom_call.1} parent=11 // pred_check_branch
          %201 = sbr.rel (%p199) target = $region20
        $region19: #{tpu_custom_call.1} parent=11 // pred_region
          _
        $region20: #{tpu_custom_call.1} parent=11 // pred_fallthru
          _
      $region12: #{tpu_custom_call.1} parent=5 // pred_fallthru
        _
      %p202 = scmp.lt.s32.totalorder %s21, 9
      // Predicated region
      $region21: #{tpu_custom_call.1} parent=5 // pred_check
        %p203 = pneg %p202
      $region22: #{tpu_custom_call.1} parent=5 // pred_check_branch
        %205 = sbr.rel (%p203) target = $region24
      $region23: #{tpu_custom_call.1} parent=5 // pred_region
        // Predicated region
        $region25: #{tpu_custom_call.1} parent=23 // pred_check
          %p206 = pneg %p76
        $region26: #{tpu_custom_call.1} parent=23 // pred_check_branch
          %208 = sbr.rel (%p206) target = $region28
        $region27: #{tpu_custom_call.1} parent=23 // pred_region
          %s209 = sand.u32 %s66, 1
          %s210 = scalar_lea.sflag [#allocation3], %s209
          %s211 = sand.u32 %s66, 1
          %s212 = smul.addr %s211, 128
          %s213 = scalar_lea.vmem [#allocation2], %s212
          %s214 = smul.u32 16, %s28
          %s216 = ssub.s32 2048, 2048
          %217 = vsyncadd %s210, %s216
          %s218 = smul.addr %s214, 3
          %s219 = sadd.s32 %s29, %s218
          %s220 = smul.addr %s219, 128
          %s221 = scalar_lea.hbm %s1, %s220
          %s222 = sshll.u32 %s213, 4
          %s223 = int_to_ptr.vmem [resolvable:$true] %s222
          %228 = dma.hbm_to_vmem [thread:$0]  %s221, 2048, %s223, %s210, 384, 128, 8
        $region28: #{tpu_custom_call.1} parent=23 // pred_fallthru
          _
        // Predicated region
        $region29: #{tpu_custom_call.1} parent=23 // pred_check
          %p229 = pneg %p102
        $region30: #{tpu_custom_call.1} parent=23 // pred_check_branch
          %231 = sbr.rel (%p229) target = $region32
        $region31: #{tpu_custom_call.1} parent=23 // pred_region
          %s232 = sand.u32 %s92, 1
          %s233 = scalar_lea.sflag [#allocation6], %s232
          %s234 = sand.u32 %s92, 1
          %s235 = smul.addr %s234, 256
          %s236 = scalar_lea.vmem [#allocation5], %s235
          %s237 = smul.u32 16, %s29
          %s239 = ssub.s32 4096, 4096
          %240 = vsyncadd %s233, %s239
          %s241 = smul.addr %s237, 2
          %s242 = smul.addr %s241, 128
          %s243 = scalar_lea.hbm %s2, %s242
          %s244 = sshll.u32 %s236, 4
          %s245 = int_to_ptr.vmem [resolvable:$true] %s244
          %250 = dma.hbm_to_vmem [thread:$0]  %s243, 4096, %s245, %s233, 256, 256, 16
        $region32: #{tpu_custom_call.1} parent=23 // pred_fallthru
          _
      $region24: #{tpu_custom_call.1} parent=5 // pred_fallthru
        _
      %p251 = scmp.le.s32.totalorder 1, %s21
      %p252 = scmp.lt.s32.totalorder %s21, 10
      %p253 = pnand %p251, %p252
      %p254 = pneg %p253
      // Predicated region
      $region33: #{tpu_custom_call.1} parent=5 // pred_check
        _
      $region34: #{tpu_custom_call.1} parent=5 // pred_check_branch
        %256 = sbr.rel (%p253) target = $region36
      $region35: #{tpu_custom_call.1} parent=5 // pred_region
        %s257 = ssub.s32 %s21, 1
        %s258 = sand.u32 %s69, 1
        %s259 = scalar_lea.sflag [#allocation3], %s258
        %s260 = sand.u32 %s69, 1
        %s261 = smul.addr %s260, 128
        %s262 = scalar_lea.vmem [#allocation2], %s261
        // Predicated region
        $region37: #{tpu_custom_call.1} parent=35 // pred_check
          %p263 = pneg %p82
        $region38: #{tpu_custom_call.1} parent=35 // pred_check_branch
          %265 = sbr.rel (%p263) target = $region40
        $region39: #{tpu_custom_call.1} parent=35 // pred_region
          %266 = dma.done %s259, 2048
        $region40: #{tpu_custom_call.1} parent=35 // pred_fallthru
          _
        %s267 = sand.u32 %s95, 1
        %s268 = scalar_lea.sflag [#allocation6], %s267
        %s269 = sand.u32 %s95, 1
        %s270 = smul.addr %s269, 256
        %s271 = scalar_lea.vmem [#allocation5], %s270
        // Predicated region
        $region41: #{tpu_custom_call.1} parent=35 // pred_check
          %p272 = pneg %p108
        $region42: #{tpu_custom_call.1} parent=35 // pred_check_branch
          %274 = sbr.rel (%p272) target = $region44
        $region43: #{tpu_custom_call.1} parent=35 // pred_region
          %275 = dma.done %s268, 4096
        $region44: #{tpu_custom_call.1} parent=35 // pred_fallthru
          _
        %p276 = pneg %p54
        %p277 = pneg %p51
        %s278 = sand.u32 %s69, 1
        %s279 = scalar_lea.sflag [#allocation3], %s278
        %s280 = sand.u32 %s69, 1
        %s281 = smul.addr %s280, 128
        %s282 = scalar_lea.vmem [#allocation2], %s281
        %p283 = pneg %p82
        %p284 = pneg %p79
        %s285 = sand.u32 %s95, 1
        %s286 = scalar_lea.sflag [#allocation6], %s285
        %s287 = sand.u32 %s95, 1
        %s288 = smul.addr %s287, 256
        %s289 = scalar_lea.vmem [#allocation5], %s288
        %p290 = pneg %p108
        %p291 = pneg %p105
        %p292 = pneg %p129
        %p293 = pneg %p126
        %p294 = pneg %p155
        %p295 = pneg %p152
        %s296 = sand.u32 %s142, 1
        %s297 = scalar_lea.sflag [#allocation4], %s296
        %s298 = sand.u32 %s142, 1
        %s299 = smul.addr %s298, 256
        %s300 = scalar_lea.vmem [#allocation7], %s299
        %p301 = pneg %p181
        %p302 = pneg %p178
        %s303 = smul.u32 16, %s30
        %p304 = scmp.lt.s32.totalorder %s303, 47
        %s305 = scalar_select %p304, %s303, 47
        %s306 = smul.addr %s305, 8
        %s307 = scalar_lea.vmem %s5, %s306
        %s308 = smul.u32 16, %s30
        %s309 = smul.u32 16, %s31
        %s310 = smul.u32 16, %s30
        %s311 = smul.u32 16, %s30
        %p312 = scmp.lt.s32.totalorder %s311, 47
        %s313 = scalar_select %p312, %s311, 47
        %s314 = smul.addr %s313, 8
        %s315 = scalar_lea.vmem %s5, %s314
        %s316 = smul.u32 16, %s30
        %p317 = scmp.eq.s32.totalorder %s31, 0
        // Predicated region
        $region45: #{tpu_custom_call.1} parent=35 // pred_check
          %p318 = pneg %p317
        $region46: #{tpu_custom_call.1} parent=35 // pred_check_branch
          %320 = sbr.rel (%p318) target = $region48
        $region47: #{tpu_custom_call.1} parent=35 // pred_region
          %321 = vst [vmem:[%s300] sm:$0xff] 0.0
          %322 = vst [vmem:[%s300 + $0x8] sm:$0xff] 0.0
          %323 = vst [vmem:[%s300 + $0x10] sm:$0xff] 0.0
          %324 = vst [vmem:[%s300 + $0x18] sm:$0xff] 0.0
          %325 = vst [vmem:[%s300 + $0x20] sm:$0xff] 0.0
          %326 = vst [vmem:[%s300 + $0x28] sm:$0xff] 0.0
          %327 = vst [vmem:[%s300 + $0x30] sm:$0xff] 0.0
          %328 = vst [vmem:[%s300 + $0x38] sm:$0xff] 0.0
          %329 = vst [vmem:[%s300 + $0x40] sm:$0xff] 0.0
          %330 = vst [vmem:[%s300 + $0x48] sm:$0xff] 0.0
          %331 = vst [vmem:[%s300 + $0x50] sm:$0xff] 0.0
          %332 = vst [vmem:[%s300 + $0x58] sm:$0xff] 0.0
          %333 = vst [vmem:[%s300 + $0x60] sm:$0xff] 0.0
          %334 = vst [vmem:[%s300 + $0x68] sm:$0xff] 0.0
          %335 = vst [vmem:[%s300 + $0x70] sm:$0xff] 0.0
          %336 = vst [vmem:[%s300 + $0x78] sm:$0xff] 0.0
          %337 = vst [vmem:[%s300 + $0x80] sm:$0xff] 0.0
          %338 = vst [vmem:[%s300 + $0x88] sm:$0xff] 0.0
          %339 = vst [vmem:[%s300 + $0x90] sm:$0xff] 0.0
          %340 = vst [vmem:[%s300 + $0x98] sm:$0xff] 0.0
          %341 = vst [vmem:[%s300 + $0xa0] sm:$0xff] 0.0
          %342 = vst [vmem:[%s300 + $0xa8] sm:$0xff] 0.0
          %343 = vst [vmem:[%s300 + $0xb0] sm:$0xff] 0.0
          %344 = vst [vmem:[%s300 + $0xb8] sm:$0xff] 0.0
          %345 = vst [vmem:[%s300 + $0xc0] sm:$0xff] 0.0
          %346 = vst [vmem:[%s300 + $0xc8] sm:$0xff] 0.0
          %347 = vst [vmem:[%s300 + $0xd0] sm:$0xff] 0.0
          %348 = vst [vmem:[%s300 + $0xd8] sm:$0xff] 0.0
          %349 = vst [vmem:[%s300 + $0xe0] sm:$0xff] 0.0
          %350 = vst [vmem:[%s300 + $0xe8] sm:$0xff] 0.0
          %351 = vst [vmem:[%s300 + $0xf0] sm:$0xff] 0.0
          %352 = vst [vmem:[%s300 + $0xf8] sm:$0xff] 0.0
        $region48: #{tpu_custom_call.1} parent=35 // pred_fallthru
          _
        %v353 = vld [vmem:[%s300] sm:$0xff]
        %v354 = vld [vmem:[%s300 + $0x8] sm:$0xff]
        %v355 = vld [vmem:[%s300 + $0x10] sm:$0xff]
        %v356 = vld [vmem:[%s300 + $0x18] sm:$0xff]
        %v357 = vld [vmem:[%s300 + $0x20] sm:$0xff]
        %v358 = vld [vmem:[%s300 + $0x28] sm:$0xff]
        %v359 = vld [vmem:[%s300 + $0x30] sm:$0xff]
        %v360 = vld [vmem:[%s300 + $0x38] sm:$0xff]
        %v361 = vld [vmem:[%s300 + $0x40] sm:$0xff]
        %v362 = vld [vmem:[%s300 + $0x48] sm:$0xff]
        %v363 = vld [vmem:[%s300 + $0x50] sm:$0xff]
        %v364 = vld [vmem:[%s300 + $0x58] sm:$0xff]
        %v365 = vld [vmem:[%s300 + $0x60] sm:$0xff]
        %v366 = vld [vmem:[%s300 + $0x68] sm:$0xff]
        %v367 = vld [vmem:[%s300 + $0x70] sm:$0xff]
        %v368 = vld [vmem:[%s300 + $0x78] sm:$0xff]
        %v369 = vld [vmem:[%s300 + $0x80] sm:$0xff]
        %v370 = vld [vmem:[%s300 + $0x88] sm:$0xff]
        %v371 = vld [vmem:[%s300 + $0x90] sm:$0xff]
        %v372 = vld [vmem:[%s300 + $0x98] sm:$0xff]
        %v373 = vld [vmem:[%s300 + $0xa0] sm:$0xff]
        %v374 = vld [vmem:[%s300 + $0xa8] sm:$0xff]
        %v375 = vld [vmem:[%s300 + $0xb0] sm:$0xff]
        %v376 = vld [vmem:[%s300 + $0xb8] sm:$0xff]
        %v377 = vld [vmem:[%s300 + $0xc0] sm:$0xff]
        %v378 = vld [vmem:[%s300 + $0xc8] sm:$0xff]
        %v379 = vld [vmem:[%s300 + $0xd0] sm:$0xff]
        %v380 = vld [vmem:[%s300 + $0xd8] sm:$0xff]
        %v381 = vld [vmem:[%s300 + $0xe0] sm:$0xff]
        %v382 = vld [vmem:[%s300 + $0xe8] sm:$0xff]
        %v383 = vld [vmem:[%s300 + $0xf0] sm:$0xff]
        %v384 = vld [vmem:[%s300 + $0xf8] sm:$0xff]
        %v385 = vld [vmem:[%s262] sm:$0xff]
        %v386 = vld [vmem:[%s262 + $0x8] sm:$0xff]
        %v387 = vld [vmem:[%s262 + $0x10] sm:$0xff]
        %v388 = vld [vmem:[%s262 + $0x18] sm:$0xff]
        %v389 = vld [vmem:[%s262 + $0x20] sm:$0xff]
        %v390 = vld [vmem:[%s262 + $0x28] sm:$0xff]
        %v391 = vld [vmem:[%s262 + $0x30] sm:$0xff]
        %v392 = vld [vmem:[%s262 + $0x38] sm:$0xff]
        %v393 = vld [vmem:[%s262 + $0x40] sm:$0xff]
        %v394 = vld [vmem:[%s262 + $0x48] sm:$0xff]
        %v395 = vld [vmem:[%s262 + $0x50] sm:$0xff]
        %v396 = vld [vmem:[%s262 + $0x58] sm:$0xff]
        %v397 = vld [vmem:[%s262 + $0x60] sm:$0xff]
        %v398 = vld [vmem:[%s262 + $0x68] sm:$0xff]
        %v399 = vld [vmem:[%s262 + $0x70] sm:$0xff]
        %v400 = vld [vmem:[%s262 + $0x78] sm:$0xff]
        %v401 = vld [vmem:[%s271] sm:$0xff]
        %v402 = vld [vmem:[%s271 + $0x8] sm:$0xff]
        %v403 = vld [vmem:[%s271 + $0x10] sm:$0xff]
        %v404 = vld [vmem:[%s271 + $0x18] sm:$0xff]
        %v405 = vld [vmem:[%s271 + $0x20] sm:$0xff]
        %v406 = vld [vmem:[%s271 + $0x28] sm:$0xff]
        %v407 = vld [vmem:[%s271 + $0x30] sm:$0xff]
        %v408 = vld [vmem:[%s271 + $0x38] sm:$0xff]
        %v409 = vld [vmem:[%s271 + $0x40] sm:$0xff]
        %v410 = vld [vmem:[%s271 + $0x48] sm:$0xff]
        %v411 = vld [vmem:[%s271 + $0x50] sm:$0xff]
        %v412 = vld [vmem:[%s271 + $0x58] sm:$0xff]
        %v413 = vld [vmem:[%s271 + $0x60] sm:$0xff]
        %v414 = vld [vmem:[%s271 + $0x68] sm:$0xff]
        %v415 = vld [vmem:[%s271 + $0x70] sm:$0xff]
        %v416 = vld [vmem:[%s271 + $0x78] sm:$0xff]
        %v417 = vld [vmem:[%s271 + $0x80] sm:$0xff]
        %v418 = vld [vmem:[%s271 + $0x88] sm:$0xff]
        %v419 = vld [vmem:[%s271 + $0x90] sm:$0xff]
        %v420 = vld [vmem:[%s271 + $0x98] sm:$0xff]
        %v421 = vld [vmem:[%s271 + $0xa0] sm:$0xff]
        %v422 = vld [vmem:[%s271 + $0xa8] sm:$0xff]
        %v423 = vld [vmem:[%s271 + $0xb0] sm:$0xff]
        %v424 = vld [vmem:[%s271 + $0xb8] sm:$0xff]
        %v425 = vld [vmem:[%s271 + $0xc0] sm:$0xff]
        %v426 = vld [vmem:[%s271 + $0xc8] sm:$0xff]
        %v427 = vld [vmem:[%s271 + $0xd0] sm:$0xff]
        %v428 = vld [vmem:[%s271 + $0xd8] sm:$0xff]
        %v429 = vld [vmem:[%s271 + $0xe0] sm:$0xff]
        %v430 = vld [vmem:[%s271 + $0xe8] sm:$0xff]
        %v431 = vld [vmem:[%s271 + $0xf0] sm:$0xff]
        %v432 = vld [vmem:[%s271 + $0xf8] sm:$0xff]
        %433 = vmatprep.subr.mxu0 %v432
        %434 = vmatpush1.msra.mxu0 %v431
        %435 = vmatprep.subr.mxu0 %v430
        %436 = vmatpush1.msra.mxu0 %v429
        %437 = vmatprep.subr.mxu0 %v428
        %438 = vmatpush1.msra.mxu0 %v427
        %439 = vmatprep.subr.mxu0 %v426
        %440 = vmatpush1.msra.mxu0 %v425
        %441 = vmatprep.subr.mxu0 %v424
        %442 = vmatpush1.msra.mxu0 %v423
        %443 = vmatprep.subr.mxu0 %v422
        %444 = vmatpush1.msra.mxu0 %v421
        %445 = vmatprep.subr.mxu0 %v420
        %446 = vmatpush1.msra.mxu0 %v419
        %447 = vmatprep.subr.mxu0 %v418
        %448 = vmatpush1.msra.mxu0 %v417
        %449 = vmatprep.subr.mxu0 %v416
        %450 = vmatpush1.msra.mxu0 %v415
        %451 = vmatprep.subr.mxu0 %v414
        %452 = vmatpush1.msra.mxu0 %v413
        %453 = vmatprep.subr.mxu0 %v412
        %454 = vmatpush1.msra.mxu0 %v411
        %455 = vmatprep.subr.mxu0 %v410
        %456 = vmatpush1.msra.mxu0 %v409
        %457 = vmatprep.subr.mxu0 %v408
        %458 = vmatpush1.msra.mxu0 %v407
        %459 = vmatprep.subr.mxu0 %v406
        %460 = vmatpush1.msra.mxu0 %v405
        %461 = vmatprep.subr.mxu0 %v404
        %462 = vmatpush1.msra.mxu0 %v403
        %463 = vmatprep.subr.mxu0 %v402
        %464 = vmatpush1.msra.mxu0 %v401
        %465 = vmatprep.subr.mxu0 0.0
        %466 = vmatpush2.msra.mxu0 0.0
        %467 = vmatprep.subr.mxu0 0.0
        %468 = vmatpush2.msra.mxu0 0.0
        %469 = vmatprep.subr.mxu0 0.0
        %470 = vmatpush2.msra.mxu0 0.0
        %471 = vmatprep.subr.mxu0 0.0
        %472 = vmatpush2.msra.mxu0 0.0
        %473 = vmatprep.subr.mxu0 0.0
        %474 = vmatpush2.msra.mxu0 0.0
        %475 = vmatprep.subr.mxu0 0.0
        %476 = vmatpush2.msra.mxu0 0.0
        %477 = vmatprep.subr.mxu0 0.0
        %478 = vmatpush2.msra.mxu0 0.0
        %479 = vmatprep.subr.mxu0 0.0
        %480 = vmatpush2.msra.mxu0 0.0
        %481 = vmatprep.subr.mxu0 0.0
        %482 = vmatpush2.msra.mxu0 0.0
        %483 = vmatprep.subr.mxu0 0.0
        %484 = vmatpush2.msra.mxu0 0.0
        %485 = vmatprep.subr.mxu0 0.0
        %486 = vmatpush2.msra.mxu0 0.0
        %487 = vmatprep.subr.mxu0 0.0
        %488 = vmatpush2.msra.mxu0 0.0
        %489 = vmatprep.subr.mxu0 0.0
        %490 = vmatpush2.msra.mxu0 0.0
        %491 = vmatprep.subr.mxu0 0.0
        %492 = vmatpush2.msra.mxu0 0.0
        %493 = vmatprep.subr.mxu0 0.0
        %494 = vmatpush2.msra.mxu0 0.0
        %495 = vmatprep.subr.mxu0 0.0
        %496 = vmatpush2.msra.mxu0 0.0
        %497 = vmatprep.mubr.f32.mxu0 0.0
        %498 = vmatmul.mubr.f32.gmra.mxu0 %v385
        %v499 = vpop.f32.mrf.mxu0
        %v500 = vadd.f32 0.0, %v499
        %v501 = vpop.f32.mrf.mxu0
        %v502 = vadd.f32 0.0, %v501
        %503 = vmatprep.mubr.f32.mxu0 0.0
        %504 = vmatmul.mubr.f32.gmra.mxu0 %v386
        %v505 = vpop.f32.mrf.mxu0
        %v506 = vadd.f32 0.0, %v505
        %v507 = vpop.f32.mrf.mxu0
        %v508 = vadd.f32 0.0, %v507
        %509 = vmatprep.mubr.f32.mxu0 0.0
        %510 = vmatmul.mubr.f32.gmra.mxu0 %v387
        %v511 = vpop.f32.mrf.mxu0
        %v512 = vadd.f32 0.0, %v511
        %v513 = vpop.f32.mrf.mxu0
        %v514 = vadd.f32 0.0, %v513
        %515 = vmatprep.mubr.f32.mxu0 0.0
        %516 = vmatmul.mubr.f32.gmra.mxu0 %v388
        %v517 = vpop.f32.mrf.mxu0
        %v518 = vadd.f32 0.0, %v517
        %v519 = vpop.f32.mrf.mxu0
        %v520 = vadd.f32 0.0, %v519
        %521 = vmatprep.mubr.f32.mxu0 0.0
        %522 = vmatmul.mubr.f32.gmra.mxu0 %v389
        %v523 = vpop.f32.mrf.mxu0
        %v524 = vadd.f32 0.0, %v523
        %v525 = vpop.f32.mrf.mxu0
        %v526 = vadd.f32 0.0, %v525
        %527 = vmatprep.mubr.f32.mxu0 0.0
        %528 = vmatmul.mubr.f32.gmra.mxu0 %v390
        %v529 = vpop.f32.mrf.mxu0
        %v530 = vadd.f32 0.0, %v529
        %v531 = vpop.f32.mrf.mxu0
        %v532 = vadd.f32 0.0, %v531
        %533 = vmatprep.mubr.f32.mxu0 0.0
        %534 = vmatmul.mubr.f32.gmra.mxu0 %v391
        %v535 = vpop.f32.mrf.mxu0
        %v536 = vadd.f32 0.0, %v535
        %v537 = vpop.f32.mrf.mxu0
        %v538 = vadd.f32 0.0, %v537
        %539 = vmatprep.mubr.f32.mxu0 0.0
        %540 = vmatmul.mubr.f32.gmra.mxu0 %v392
        %v541 = vpop.f32.mrf.mxu0
        %v542 = vadd.f32 0.0, %v541
        %v543 = vpop.f32.mrf.mxu0
        %v544 = vadd.f32 0.0, %v543
        %545 = vmatprep.mubr.f32.mxu0 0.0
        %546 = vmatmul.mubr.f32.gmra.mxu0 %v393
        %v547 = vpop.f32.mrf.mxu0
        %v548 = vadd.f32 0.0, %v547
        %v549 = vpop.f32.mrf.mxu0
        %v550 = vadd.f32 0.0, %v549
        %551 = vmatprep.mubr.f32.mxu0 0.0
        %552 = vmatmul.mubr.f32.gmra.mxu0 %v394
        %v553 = vpop.f32.mrf.mxu0
        %v554 = vadd.f32 0.0, %v553
        %v555 = vpop.f32.mrf.mxu0
        %v556 = vadd.f32 0.0, %v555
        %557 = vmatprep.mubr.f32.mxu0 0.0
        %558 = vmatmul.mubr.f32.gmra.mxu0 %v395
        %v559 = vpop.f32.mrf.mxu0
        %v560 = vadd.f32 0.0, %v559
        %v561 = vpop.f32.mrf.mxu0
        %v562 = vadd.f32 0.0, %v561
        %563 = vmatprep.mubr.f32.mxu0 0.0
        %564 = vmatmul.mubr.f32.gmra.mxu0 %v396
        %v565 = vpop.f32.mrf.mxu0
        %v566 = vadd.f32 0.0, %v565
        %v567 = vpop.f32.mrf.mxu0
        %v568 = vadd.f32 0.0, %v567
        %569 = vmatprep.mubr.f32.mxu0 0.0
        %570 = vmatmul.mubr.f32.gmra.mxu0 %v397
        %v571 = vpop.f32.mrf.mxu0
        %v572 = vadd.f32 0.0, %v571
        %v573 = vpop.f32.mrf.mxu0
        %v574 = vadd.f32 0.0, %v573
        %575 = vmatprep.mubr.f32.mxu0 0.0
        %576 = vmatmul.mubr.f32.gmra.mxu0 %v398
        %v577 = vpop.f32.mrf.mxu0
        %v578 = vadd.f32 0.0, %v577
        %v579 = vpop.f32.mrf.mxu0
        %v580 = vadd.f32 0.0, %v579
        %581 = vmatprep.mubr.f32.mxu0 0.0
        %582 = vmatmul.mubr.f32.gmra.mxu0 %v399
        %v583 = vpop.f32.mrf.mxu0
        %v584 = vadd.f32 0.0, %v583
        %v585 = vpop.f32.mrf.mxu0
        %v586 = vadd.f32 0.0, %v585
        %587 = vmatprep.mubr.f32.mxu0 0.0
        %588 = vmatmul.mubr.f32.gmra.mxu0 %v400
        %v589 = vpop.f32.mrf.mxu0
        %v590 = vadd.f32 0.0, %v589
        %v591 = vpop.f32.mrf.mxu0
        %v592 = vadd.f32 0.0, %v591
        %593 = vdwg.mxu0
        %v594 = vadd.f32 %v353, %v500
        %v595 = vadd.f32 %v354, %v502
        %v596 = vadd.f32 %v355, %v506
        %v597 = vadd.f32 %v356, %v508
        %v598 = vadd.f32 %v357, %v512
        %v599 = vadd.f32 %v358, %v514
        %v600 = vadd.f32 %v359, %v518
        %v601 = vadd.f32 %v360, %v520
        %v602 = vadd.f32 %v361, %v524
        %v603 = vadd.f32 %v362, %v526
        %v604 = vadd.f32 %v363, %v530
        %v605 = vadd.f32 %v364, %v532
        %v606 = vadd.f32 %v365, %v536
        %v607 = vadd.f32 %v366, %v538
        %v608 = vadd.f32 %v367, %v542
        %v609 = vadd.f32 %v368, %v544
        %v610 = vadd.f32 %v369, %v548
        %v611 = vadd.f32 %v370, %v550
        %v612 = vadd.f32 %v371, %v554
        %v613 = vadd.f32 %v372, %v556
        %v614 = vadd.f32 %v373, %v560
        %v615 = vadd.f32 %v374, %v562
        %v616 = vadd.f32 %v375, %v566
        %v617 = vadd.f32 %v376, %v568
        %v618 = vadd.f32 %v377, %v572
        %v619 = vadd.f32 %v378, %v574
        %v620 = vadd.f32 %v379, %v578
        %v621 = vadd.f32 %v380, %v580
        %v622 = vadd.f32 %v381, %v584
        %v623 = vadd.f32 %v382, %v586
        %v624 = vadd.f32 %v383, %v590
        %v625 = vadd.f32 %v384, %v592
        %626 = vst [vmem:[%s300] sm:$0xff] %v594
        %627 = vst [vmem:[%s300 + $0x8] sm:$0xff] %v595
        %628 = vst [vmem:[%s300 + $0x10] sm:$0xff] %v596
        %629 = vst [vmem:[%s300 + $0x18] sm:$0xff] %v597
        %630 = vst [vmem:[%s300 + $0x20] sm:$0xff] %v598
        %631 = vst [vmem:[%s300 + $0x28] sm:$0xff] %v599
        %632 = vst [vmem:[%s300 + $0x30] sm:$0xff] %v600
        %633 = vst [vmem:[%s300 + $0x38] sm:$0xff] %v601
        %634 = vst [vmem:[%s300 + $0x40] sm:$0xff] %v602
        %635 = vst [vmem:[%s300 + $0x48] sm:$0xff] %v603
        %636 = vst [vmem:[%s300 + $0x50] sm:$0xff] %v604
        %637 = vst [vmem:[%s300 + $0x58] sm:$0xff] %v605
        %638 = vst [vmem:[%s300 + $0x60] sm:$0xff] %v606
        %639 = vst [vmem:[%s300 + $0x68] sm:$0xff] %v607
        %640 = vst [vmem:[%s300 + $0x70] sm:$0xff] %v608
        %641 = vst [vmem:[%s300 + $0x78] sm:$0xff] %v609
        %642 = vst [vmem:[%s300 + $0x80] sm:$0xff] %v610
        %643 = vst [vmem:[%s300 + $0x88] sm:$0xff] %v611
        %644 = vst [vmem:[%s300 + $0x90] sm:$0xff] %v612
        %645 = vst [vmem:[%s300 + $0x98] sm:$0xff] %v613
        %646 = vst [vmem:[%s300 + $0xa0] sm:$0xff] %v614
        %647 = vst [vmem:[%s300 + $0xa8] sm:$0xff] %v615
        %648 = vst [vmem:[%s300 + $0xb0] sm:$0xff] %v616
        %649 = vst [vmem:[%s300 + $0xb8] sm:$0xff] %v617
        %650 = vst [vmem:[%s300 + $0xc0] sm:$0xff] %v618
        %651 = vst [vmem:[%s300 + $0xc8] sm:$0xff] %v619
        %652 = vst [vmem:[%s300 + $0xd0] sm:$0xff] %v620
        %653 = vst [vmem:[%s300 + $0xd8] sm:$0xff] %v621
        %654 = vst [vmem:[%s300 + $0xe0] sm:$0xff] %v622
        %655 = vst [vmem:[%s300 + $0xe8] sm:$0xff] %v623
        %656 = vst [vmem:[%s300 + $0xf0] sm:$0xff] %v624
        %657 = vst [vmem:[%s300 + $0xf8] sm:$0xff] %v625
        %p658 = scmp.eq.s32.totalorder %s31, 2
        // Predicated region
        $region49: #{tpu_custom_call.1} parent=35 // pred_check
          %p659 = pneg %p658
        $region50: #{tpu_custom_call.1} parent=35 // pred_check_branch
          %661 = sbr.rel (%p659) target = $region52
        $region51: #{tpu_custom_call.1} parent=35 // pred_region
          %v662 = vld [vmem:[%s300] sm:$0xff]
          %v663 = vld [vmem:[%s300 + $0x8] sm:$0xff]
          %v664 = vld [vmem:[%s300 + $0x10] sm:$0xff]
          %v665 = vld [vmem:[%s300 + $0x18] sm:$0xff]
          %v666 = vld [vmem:[%s300 + $0x20] sm:$0xff]
          %v667 = vld [vmem:[%s300 + $0x28] sm:$0xff]
          %v668 = vld [vmem:[%s300 + $0x30] sm:$0xff]
          %v669 = vld [vmem:[%s300 + $0x38] sm:$0xff]
          %v670 = vld [vmem:[%s300 + $0x40] sm:$0xff]
          %v671 = vld [vmem:[%s300 + $0x48] sm:$0xff]
          %v672 = vld [vmem:[%s300 + $0x50] sm:$0xff]
          %v673 = vld [vmem:[%s300 + $0x58] sm:$0xff]
          %v674 = vld [vmem:[%s300 + $0x60] sm:$0xff]
          %v675 = vld [vmem:[%s300 + $0x68] sm:$0xff]
          %v676 = vld [vmem:[%s300 + $0x70] sm:$0xff]
          %v677 = vld [vmem:[%s300 + $0x78] sm:$0xff]
          %v678 = vld [vmem:[%s300 + $0x80] sm:$0xff]
          %v679 = vld [vmem:[%s300 + $0x88] sm:$0xff]
          %v680 = vld [vmem:[%s300 + $0x90] sm:$0xff]
          %v681 = vld [vmem:[%s300 + $0x98] sm:$0xff]
          %v682 = vld [vmem:[%s300 + $0xa0] sm:$0xff]
          %v683 = vld [vmem:[%s300 + $0xa8] sm:$0xff]
          %v684 = vld [vmem:[%s300 + $0xb0] sm:$0xff]
          %v685 = vld [vmem:[%s300 + $0xb8] sm:$0xff]
          %v686 = vld [vmem:[%s300 + $0xc0] sm:$0xff]
          %v687 = vld [vmem:[%s300 + $0xc8] sm:$0xff]
          %v688 = vld [vmem:[%s300 + $0xd0] sm:$0xff]
          %v689 = vld [vmem:[%s300 + $0xd8] sm:$0xff]
          %v690 = vld [vmem:[%s300 + $0xe0] sm:$0xff]
          %v691 = vld [vmem:[%s300 + $0xe8] sm:$0xff]
          %v692 = vld [vmem:[%s300 + $0xf0] sm:$0xff]
          %v693 = vld [vmem:[%s300 + $0xf8] sm:$0xff]
          %v694 = vld [vmem:[%s0] sm:$0x3]
          %v696 = vlaneseq
          %v697 = vshrl.u32 %v696, 7
          %v698 = vsub.s32 0, %v697
          %v699 = vrot.slane %v694, %v698
          %v700 = vlaneseq
          %v701 = vshrl.u32 %v700, 7
          %v702 = vsub.s32 1, %v701
          %v703 = vrot.slane %v694, %v702
          %v706 = vmul.f32 %v662, %v699
          %v707 = vmul.f32 %v663, %v703
          %v708 = vmul.f32 %v664, %v699
          %v709 = vmul.f32 %v665, %v703
          %v710 = vmul.f32 %v666, %v699
          %v711 = vmul.f32 %v667, %v703
          %v712 = vmul.f32 %v668, %v699
          %v713 = vmul.f32 %v669, %v703
          %v714 = vmul.f32 %v670, %v699
          %v715 = vmul.f32 %v671, %v703
          %v716 = vmul.f32 %v672, %v699
          %v717 = vmul.f32 %v673, %v703
          %v718 = vmul.f32 %v674, %v699
          %v719 = vmul.f32 %v675, %v703
          %v720 = vmul.f32 %v676, %v699
          %v721 = vmul.f32 %v677, %v703
          %v722 = vmul.f32 %v678, %v699
          %v723 = vmul.f32 %v679, %v703
          %v724 = vmul.f32 %v680, %v699
          %v725 = vmul.f32 %v681, %v703
          %v726 = vmul.f32 %v682, %v699
          %v727 = vmul.f32 %v683, %v703
          %v728 = vmul.f32 %v684, %v699
          %v729 = vmul.f32 %v685, %v703
          %v730 = vmul.f32 %v686, %v699
          %v731 = vmul.f32 %v687, %v703
          %v732 = vmul.f32 %v688, %v699
          %v733 = vmul.f32 %v689, %v703
          %v734 = vmul.f32 %v690, %v699
          %v735 = vmul.f32 %v691, %v703
          %v736 = vmul.f32 %v692, %v699
          %v737 = vmul.f32 %v693, %v703
          %738 = vst [vmem:[%s300] sm:$0xff] %v706
          %739 = vst [vmem:[%s300 + $0x8] sm:$0xff] %v707
          %740 = vst [vmem:[%s300 + $0x10] sm:$0xff] %v708
          %741 = vst [vmem:[%s300 + $0x18] sm:$0xff] %v709
          %742 = vst [vmem:[%s300 + $0x20] sm:$0xff] %v710
          %743 = vst [vmem:[%s300 + $0x28] sm:$0xff] %v711
          %744 = vst [vmem:[%s300 + $0x30] sm:$0xff] %v712
          %745 = vst [vmem:[%s300 + $0x38] sm:$0xff] %v713
          %746 = vst [vmem:[%s300 + $0x40] sm:$0xff] %v714
          %747 = vst [vmem:[%s300 + $0x48] sm:$0xff] %v715
          %748 = vst [vmem:[%s300 + $0x50] sm:$0xff] %v716
          %749 = vst [vmem:[%s300 + $0x58] sm:$0xff] %v717
          %750 = vst [vmem:[%s300 + $0x60] sm:$0xff] %v718
          %751 = vst [vmem:[%s300 + $0x68] sm:$0xff] %v719
          %752 = vst [vmem:[%s300 + $0x70] sm:$0xff] %v720
          %753 = vst [vmem:[%s300 + $0x78] sm:$0xff] %v721
          %754 = vst [vmem:[%s300 + $0x80] sm:$0xff] %v722
          %755 = vst [vmem:[%s300 + $0x88] sm:$0xff] %v723
          %756 = vst [vmem:[%s300 + $0x90] sm:$0xff] %v724
          %757 = vst [vmem:[%s300 + $0x98] sm:$0xff] %v725
          %758 = vst [vmem:[%s300 + $0xa0] sm:$0xff] %v726
          %759 = vst [vmem:[%s300 + $0xa8] sm:$0xff] %v727
          %760 = vst [vmem:[%s300 + $0xb0] sm:$0xff] %v728
          %761 = vst [vmem:[%s300 + $0xb8] sm:$0xff] %v729
          %762 = vst [vmem:[%s300 + $0xc0] sm:$0xff] %v730
          %763 = vst [vmem:[%s300 + $0xc8] sm:$0xff] %v731
          %764 = vst [vmem:[%s300 + $0xd0] sm:$0xff] %v732
          %765 = vst [vmem:[%s300 + $0xd8] sm:$0xff] %v733
          %766 = vst [vmem:[%s300 + $0xe0] sm:$0xff] %v734
          %767 = vst [vmem:[%s300 + $0xe8] sm:$0xff] %v735
          %768 = vst [vmem:[%s300 + $0xf0] sm:$0xff] %v736
          %769 = vst [vmem:[%s300 + $0xf8] sm:$0xff] %v737
          %v770 = vld [vmem:[%s3] sm:$0xff]
          %v771 = vld [vmem:[%s3 + $0x8] sm:$0xff]
          %v772 = vld [vmem:[%s3 + $0x10] sm:$0xff]
          %v773 = vld [vmem:[%s3 + $0x18] sm:$0xff]
          %v774 = vld [vmem:[%s3 + $0x20] sm:$0xff]
          %v775 = vld [vmem:[%s3 + $0x28] sm:$0xff]
          %v776 = vld [vmem:[%s3 + $0x30] sm:$0xff]
          %v777 = vld [vmem:[%s3 + $0x38] sm:$0xff]
          %v778 = vld [vmem:[%s3 + $0x40] sm:$0xff]
          %v779 = vld [vmem:[%s3 + $0x48] sm:$0xff]
          %v780 = vld [vmem:[%s3 + $0x50] sm:$0xff]
          %v781 = vld [vmem:[%s3 + $0x58] sm:$0xff]
          %v782 = vld [vmem:[%s3 + $0x60] sm:$0xff]
          %v783 = vld [vmem:[%s3 + $0x68] sm:$0xff]
          %v784 = vld [vmem:[%s3 + $0x70] sm:$0xff]
          %v785 = vld [vmem:[%s3 + $0x78] sm:$0xff]
          %v786 = vld [vmem:[%s3 + $0x80] sm:$0xff]
          %v787 = vld [vmem:[%s3 + $0x88] sm:$0xff]
          %v788 = vld [vmem:[%s3 + $0x90] sm:$0xff]
          %v789 = vld [vmem:[%s3 + $0x98] sm:$0xff]
          %v790 = vld [vmem:[%s3 + $0xa0] sm:$0xff]
          %v791 = vld [vmem:[%s3 + $0xa8] sm:$0xff]
          %v792 = vld [vmem:[%s3 + $0xb0] sm:$0xff]
          %v793 = vld [vmem:[%s3 + $0xb8] sm:$0xff]
          %v794 = vld [vmem:[%s3 + $0xc0] sm:$0xff]
          %v795 = vld [vmem:[%s3 + $0xc8] sm:$0xff]
          %v796 = vld [vmem:[%s3 + $0xd0] sm:$0xff]
          %v797 = vld [vmem:[%s3 + $0xd8] sm:$0xff]
          %v798 = vld [vmem:[%s3 + $0xe0] sm:$0xff]
          %v799 = vld [vmem:[%s3 + $0xe8] sm:$0xff]
          %v800 = vld [vmem:[%s3 + $0xf0] sm:$0xff]
          %v801 = vld [vmem:[%s3 + $0xf8] sm:$0xff]
          %802 = vmatprep.subr.mxu0 0.0
          %803 = vmatpush1.msra.mxu0 %v785
          %804 = vmatprep.subr.mxu0 0.0
          %805 = vmatpush1.msra.mxu0 %v784
          %806 = vmatprep.subr.mxu0 0.0
          %807 = vmatpush1.msra.mxu0 %v783
          %808 = vmatprep.subr.mxu0 0.0
          %809 = vmatpush1.msra.mxu0 %v782
          %810 = vmatprep.subr.mxu0 0.0
          %811 = vmatpush1.msra.mxu0 %v781
          %812 = vmatprep.subr.mxu0 0.0
          %813 = vmatpush1.msra.mxu0 %v780
          %814 = vmatprep.subr.mxu0 0.0
          %815 = vmatpush1.msra.mxu0 %v779
          %816 = vmatprep.subr.mxu0 0.0
          %817 = vmatpush1.msra.mxu0 %v778
          %818 = vmatprep.subr.mxu0 0.0
          %819 = vmatpush1.msra.mxu0 %v777
          %820 = vmatprep.subr.mxu0 0.0
          %821 = vmatpush1.msra.mxu0 %v776
          %822 = vmatprep.subr.mxu0 0.0
          %823 = vmatpush1.msra.mxu0 %v775
          %824 = vmatprep.subr.mxu0 0.0
          %825 = vmatpush1.msra.mxu0 %v774
          %826 = vmatprep.subr.mxu0 0.0
          %827 = vmatpush1.msra.mxu0 %v773
          %828 = vmatprep.subr.mxu0 0.0
          %829 = vmatpush1.msra.mxu0 %v772
          %830 = vmatprep.subr.mxu0 0.0
          %831 = vmatpush1.msra.mxu0 %v771
          %832 = vmatprep.subr.mxu0 0.0
          %833 = vmatpush1.msra.mxu0 %v770
          %834 = vmatprep.subr.mxu0 0.0
          %835 = vmatpush2.msra.mxu0 %v801
          %836 = vmatprep.subr.mxu0 0.0
          %837 = vmatpush2.msra.mxu0 %v800
          %838 = vmatprep.subr.mxu0 0.0
          %839 = vmatpush2.msra.mxu0 %v799
          %840 = vmatprep.subr.mxu0 0.0
          %841 = vmatpush2.msra.mxu0 %v798
          %842 = vmatprep.subr.mxu0 0.0
          %843 = vmatpush2.msra.mxu0 %v797
          %844 = vmatprep.subr.mxu0 0.0
          %845 = vmatpush2.msra.mxu0 %v796
          %846 = vmatprep.subr.mxu0 0.0
          %847 = vmatpush2.msra.mxu0 %v795
          %848 = vmatprep.subr.mxu0 0.0
          %849 = vmatpush2.msra.mxu0 %v794
          %850 = vmatprep.subr.mxu0 0.0
          %851 = vmatpush2.msra.mxu0 %v793
          %852 = vmatprep.subr.mxu0 0.0
          %853 = vmatpush2.msra.mxu0 %v792
          %854 = vmatprep.subr.mxu0 0.0
          %855 = vmatpush2.msra.mxu0 %v791
          %856 = vmatprep.subr.mxu0 0.0
          %857 = vmatpush2.msra.mxu0 %v790
          %858 = vmatprep.subr.mxu0 0.0
          %859 = vmatpush2.msra.mxu0 %v789
          %860 = vmatprep.subr.mxu0 0.0
          %861 = vmatpush2.msra.mxu0 %v788
          %862 = vmatprep.subr.mxu0 0.0
          %863 = vmatpush2.msra.mxu0 %v787
          %864 = vmatprep.subr.mxu0 0.0
          %865 = vmatpush2.msra.mxu0 %v786
          %866 = vmatprep.mubr.f32.mxu0 %v707
          %867 = vmatmul.mubr.f32.gmra.mxu0 %v706
          %v868 = vpop.f32.mrf.mxu0
          %v869 = vadd.f32 0.0, %v868
          %v870 = vpop.f32.mrf.mxu0
          %871 = vmatprep.mubr.f32.mxu0 %v709
          %872 = vmatmul.mubr.f32.gmra.mxu0 %v708
          %v873 = vpop.f32.mrf.mxu0
          %v874 = vadd.f32 0.0, %v873
          %v875 = vpop.f32.mrf.mxu0
          %876 = vmatprep.mubr.f32.mxu0 %v711
          %877 = vmatmul.mubr.f32.gmra.mxu0 %v710
          %v878 = vpop.f32.mrf.mxu0
          %v879 = vadd.f32 0.0, %v878
          %v880 = vpop.f32.mrf.mxu0
          %881 = vmatprep.mubr.f32.mxu0 %v713
          %882 = vmatmul.mubr.f32.gmra.mxu0 %v712
          %v883 = vpop.f32.mrf.mxu0
          %v884 = vadd.f32 0.0, %v883
          %v885 = vpop.f32.mrf.mxu0
          %886 = vmatprep.mubr.f32.mxu0 %v715
          %887 = vmatmul.mubr.f32.gmra.mxu0 %v714
          %v888 = vpop.f32.mrf.mxu0
          %v889 = vadd.f32 0.0, %v888
          %v890 = vpop.f32.mrf.mxu0
          %891 = vmatprep.mubr.f32.mxu0 %v717
          %892 = vmatmul.mubr.f32.gmra.mxu0 %v716
          %v893 = vpop.f32.mrf.mxu0
          %v894 = vadd.f32 0.0, %v893
          %v895 = vpop.f32.mrf.mxu0
          %896 = vmatprep.mubr.f32.mxu0 %v719
          %897 = vmatmul.mubr.f32.gmra.mxu0 %v718
          %v898 = vpop.f32.mrf.mxu0
          %v899 = vadd.f32 0.0, %v898
          %v900 = vpop.f32.mrf.mxu0
          %901 = vmatprep.mubr.f32.mxu0 %v721
          %902 = vmatmul.mubr.f32.gmra.mxu0 %v720
          %v903 = vpop.f32.mrf.mxu0
          %v904 = vadd.f32 0.0, %v903
          %v905 = vpop.f32.mrf.mxu0
          %906 = vmatprep.mubr.f32.mxu0 %v723
          %907 = vmatmul.mubr.f32.gmra.mxu0 %v722
          %v908 = vpop.f32.mrf.mxu0
          %v909 = vadd.f32 0.0, %v908
          %v910 = vpop.f32.mrf.mxu0
          %911 = vmatprep.mubr.f32.mxu0 %v725
          %912 = vmatmul.mubr.f32.gmra.mxu0 %v724
          %v913 = vpop.f32.mrf.mxu0
          %v914 = vadd.f32 0.0, %v913
          %v915 = vpop.f32.mrf.mxu0
          %916 = vmatprep.mubr.f32.mxu0 %v727
          %917 = vmatmul.mubr.f32.gmra.mxu0 %v726
          %v918 = vpop.f32.mrf.mxu0
          %v919 = vadd.f32 0.0, %v918
          %v920 = vpop.f32.mrf.mxu0
          %921 = vmatprep.mubr.f32.mxu0 %v729
          %922 = vmatmul.mubr.f32.gmra.mxu0 %v728
          %v923 = vpop.f32.mrf.mxu0
          %v924 = vadd.f32 0.0, %v923
          %v925 = vpop.f32.mrf.mxu0
          %926 = vmatprep.mubr.f32.mxu0 %v731
          %927 = vmatmul.mubr.f32.gmra.mxu0 %v730
          %v928 = vpop.f32.mrf.mxu0
          %v929 = vadd.f32 0.0, %v928
          %v930 = vpop.f32.mrf.mxu0
          %931 = vmatprep.mubr.f32.mxu0 %v733
          %932 = vmatmul.mubr.f32.gmra.mxu0 %v732
          %v933 = vpop.f32.mrf.mxu0
          %v934 = vadd.f32 0.0, %v933
          %v935 = vpop.f32.mrf.mxu0
          %936 = vmatprep.mubr.f32.mxu0 %v735
          %937 = vmatmul.mubr.f32.gmra.mxu0 %v734
          %v938 = vpop.f32.mrf.mxu0
          %v939 = vadd.f32 0.0, %v938
          %v940 = vpop.f32.mrf.mxu0
          %941 = vmatprep.mubr.f32.mxu0 %v737
          %942 = vmatmul.mubr.f32.gmra.mxu0 %v736
          %v943 = vpop.f32.mrf.mxu0
          %v944 = vadd.f32 0.0, %v943
          %v945 = vpop.f32.mrf.mxu0
          %946 = vdwg.mxu0
          %vm947 = vcmask 261120
          %948 = vst.msk [vmem:[%s315] sm:$0xff] %vm947, %v869
          %949 = vst.msk [vmem:[%s315 + $0x8] sm:$0xff] %vm947, %v874
          %950 = vst.msk [vmem:[%s315 + $0x10] sm:$0xff] %vm947, %v879
          %951 = vst.msk [vmem:[%s315 + $0x18] sm:$0xff] %vm947, %v884
          %952 = vst.msk [vmem:[%s315 + $0x20] sm:$0xff] %vm947, %v889
          %953 = vst.msk [vmem:[%s315 + $0x28] sm:$0xff] %vm947, %v894
          %954 = vst.msk [vmem:[%s315 + $0x30] sm:$0xff] %vm947, %v899
          %955 = vst.msk [vmem:[%s315 + $0x38] sm:$0xff] %vm947, %v904
          %956 = vst.msk [vmem:[%s315 + $0x40] sm:$0xff] %vm947, %v909
          %957 = vst.msk [vmem:[%s315 + $0x48] sm:$0xff] %vm947, %v914
          %958 = vst.msk [vmem:[%s315 + $0x50] sm:$0xff] %vm947, %v919
          %959 = vst.msk [vmem:[%s315 + $0x58] sm:$0xff] %vm947, %v924
          %960 = vst.msk [vmem:[%s315 + $0x60] sm:$0xff] %vm947, %v929
          %961 = vst.msk [vmem:[%s315 + $0x68] sm:$0xff] %vm947, %v934
          %962 = vst.msk [vmem:[%s315 + $0x70] sm:$0xff] %vm947, %v939
          %963 = vst.msk [vmem:[%s315 + $0x78] sm:$0xff] %vm947, %v944
        $region52: #{tpu_custom_call.1} parent=35 // pred_fallthru
          _
        %s964 = sand.u32 %s142, 1
        %s965 = scalar_lea.sflag [#allocation4], %s964
        %s966 = sand.u32 %s142, 1
        %s967 = smul.addr %s966, 256
        %s968 = scalar_lea.vmem [#allocation7], %s967
        %s969 = smul.u32 16, %s30
        %p970 = scmp.lt.s32.totalorder %s969, 47
        %s971 = scalar_select %p970, %s969, 47
        %s972 = smul.addr %s971, 8
        %s973 = scalar_lea.vmem %s5, %s972
        // Predicated region
        $region53: #{tpu_custom_call.1} parent=35 // pred_check
          %p974 = pneg %p152
        $region54: #{tpu_custom_call.1} parent=35 // pred_check_branch
          %976 = sbr.rel (%p974) target = $region56
        $region55: #{tpu_custom_call.1} parent=35 // pred_region
          %s977 = smul.u32 16, %s30
          %s979 = ssub.s32 4096, 4096
          %980 = vsyncadd %s965, %s979
          %s981 = smul.addr %s977, 2
          %s982 = smul.addr %s981, 128
          %s983 = scalar_lea.hbm %s4, %s982
          %s984 = sshll.u32 %s968, 4
          %s985 = int_to_ptr.vmem [resolvable:$true] %s984
          %990 = dma.vmem_to_hbm [thread:$0]  %s985, 4096, %s983, %s965, 256, 256, 16
        $region56: #{tpu_custom_call.1} parent=35 // pred_fallthru
          _
        // Predicated region
        $region57: #{tpu_custom_call.1} parent=35 // pred_check
          %p991 = pneg %p178
        $region58: #{tpu_custom_call.1} parent=35 // pred_check_branch
          %993 = sbr.rel (%p991) target = $region60
        $region59: #{tpu_custom_call.1} parent=35 // pred_region
          %s994 = smul.u32 16, %s30
        $region60: #{tpu_custom_call.1} parent=35 // pred_fallthru
          _
      $region36: #{tpu_custom_call.1} parent=5 // pred_fallthru
        _
      %p995 = scmp.le.s32.totalorder 2, %s21
      // Predicated region
      $region61: #{tpu_custom_call.1} parent=5 // pred_check
        %p996 = pneg %p995
      $region62: #{tpu_custom_call.1} parent=5 // pred_check_branch
        %998 = sbr.rel (%p996) target = $region64
      $region63: #{tpu_custom_call.1} parent=5 // pred_region
        %s999 = ssub.s32 %s21, 2
        // Predicated region
        $region65: #{tpu_custom_call.1} parent=63 // pred_check
          %p1000 = pneg %p158
        $region66: #{tpu_custom_call.1} parent=63 // pred_check_branch
          %1002 = sbr.rel (%p1000) target = $region68
        $region67: #{tpu_custom_call.1} parent=63 // pred_region
          %s1003 = sand.u32 %s143, 1
          %s1004 = scalar_lea.sflag [#allocation4], %s1003
          %s1005 = sand.u32 %s143, 1
          %s1006 = smul.addr %s1005, 256
          %s1007 = scalar_lea.vmem [#allocation7], %s1006
          %1008 = dma.done %s1004, 4096
        $region68: #{tpu_custom_call.1} parent=63 // pred_fallthru
          _
        // Predicated region
        $region69: #{tpu_custom_call.1} parent=63 // pred_check
          %p1009 = pneg %p184
        $region70: #{tpu_custom_call.1} parent=63 // pred_check_branch
          %1011 = sbr.rel (%p1009) target = $region72
        $region71: #{tpu_custom_call.1} parent=63 // pred_region
          %s1012 = smul.u32 16, %s32
          %p1013 = scmp.lt.s32.totalorder %s1012, 47
          %s1014 = scalar_select %p1013, %s1012, 47
          %s1015 = smul.addr %s1014, 8
          %s1016 = scalar_lea.vmem %s5, %s1015
        $region72: #{tpu_custom_call.1} parent=63 // pred_fallthru
          _
      $region64: #{tpu_custom_call.1} parent=5 // pred_fallthru
        _
    $region6: #{tpu_custom_call.1} parent=1 // loop_footer
      %s25 = sadd.s32 1, %s21
    $region7: #{tpu_custom_call.1} parent=1 // loop_footer_branch
      %20 = sbr.rel target = $region3
    $region8: #{tpu_custom_call.1} parent=1 // loop_exit
      _
    %1017 = vsyncpa [#allocation3], 1
    %s1018 = scalar_lea.sflag [#allocation3], 1
    %1019 = vsyncpa %s1018, 1
    %1020 = vsyncpa [#allocation6], 1
    %s1021 = scalar_lea.sflag [#allocation6], 1
    %1022 = vsyncpa %s1021, 1
    %1023 = vsyncpa [#allocation4], 1
    %s1024 = scalar_lea.sflag [#allocation4], 1
    %1025 = vsyncpa %s1024, 1

</llo_original>
